<compile_context>
chip_gen: v7x
topology: tpu7x:2x2x1
jax: 0.10.0
libtpu: 0.0.40
codegen_flags: <defaults>
</compile_context>

<pallas_src>
import jax
import jax.numpy as jnp
from jax.experimental import pallas as pl
from jax.experimental.pallas import tpu as pltpu


def _add_pe_kernel(x_ref, pe_ref, o_ref):
    # x_ref / o_ref: (tB, tC) tile of the flattened embeddings.
    # pe_ref:        (1, tC) tile of the positional-encoding row, broadcast
    #                over the batch-row axis by the VPU add.
    o_ref[...] = x_ref[...] + pe_ref[...]


def _sinusoidal_table(seq_len, d_model, dtype):
    """(S, D) table matching the PyTorch module's numpy construction."""
    pos = jnp.arange(seq_len, dtype=jnp.float32)[:, None]
    i = jnp.arange(d_model)
    exponent = ((i // 2) * 2).astype(jnp.float32) / float(d_model)
    angle = pos / jnp.power(10000.0, exponent)
    pe = jnp.where((i % 2) == 0, jnp.sin(angle), jnp.cos(angle))
    return pe.astype(dtype)


def _round_tile(extent, unit, cap):
    """Full extent if it fits under `cap`, else the largest multiple of `unit`
    that is <= cap (never below `unit`).  No divisibility requirement: the
    grid uses pl.cdiv and partial blocks handle the remainder."""
    if extent <= cap:
        return extent
    return max(unit, (cap // unit) * unit)


def _plan_tiles(B, C, itemsize):
    """Pick (tB, tC, vmem_limit_bytes) from a byte budget, dtype-aware."""
    budget = 4 * 1024 * 1024  # ~4 MiB per x/out tile (measured knee ~85% BW)
    sub_unit = {4: 8, 2: 16, 1: 32}.get(itemsize, 8)

    # Rows first (capped), then let columns take the leftover budget.
    tB = _round_tile(B, sub_unit, 512)
    tC = _round_tile(C, 128, max(128, budget // max(tB * itemsize, 1)))
    # If C is small the tile may still be far under budget: grow rows back.
    tB = _round_tile(B, sub_unit, max(sub_unit, budget // max(tC * itemsize, 1)))

    rB = pl.cdiv(B, tB)
    cB = pl.cdiv(C, tC)

    # v7x has 2 TensorCores: make sure a "parallel" axis has >= 2 blocks when
    # the array is big enough for the split to matter (prefer rows).
    total_bytes = B * C * itemsize
    if rB == 1 and cB == 1 and total_bytes > (1 << 20):
        if B >= 2 * sub_unit:
            tB = max(sub_unit, (((B + 1) // 2) // sub_unit) * sub_unit)
        elif C >= 2 * 128:
            tC = max(128, (((C + 1) // 2) // 128) * 128)

    # VMEM limit from actual usage: double-buffered x + out tiles, plus the
    # (small) PE row, with 2x margin.  Clamp to 48 MiB (v7x has 64 MiB total).
    tile_bytes = tB * tC * itemsize
    pe_bytes = tC * itemsize
    needed = 2 * (2 * tile_bytes) + 2 * pe_bytes
    vmem_limit = min(48 * 1024 * 1024, max(2 * needed, 8 * 1024 * 1024))

    return tB, tC, vmem_limit


@jax.jit
def positional_encoding_forward(embeddings):
    """embeddings: (B, S, D) -> (B, S, D), out = embeddings + PE(S, D)."""
    B, S, D = embeddings.shape
    dtype = embeddings.dtype
    itemsize = jnp.dtype(dtype).itemsize
    C = S * D

    # Hoisted PE table: one lane-dense row that repeats per batch element.
    pe_row = _sinusoidal_table(S, D, dtype).reshape(1, C)
    x2 = embeddings.reshape(B, C)

    tB, tC, vmem_limit = _plan_tiles(B, C, itemsize)
    grid = (pl.cdiv(B, tB), pl.cdiv(C, tC))  # rows outer, cols inner

    out2 = pl.pallas_call(
        _add_pe_kernel,
        out_shape=jax.ShapeDtypeStruct((B, C), dtype),
        grid_spec=pltpu.PrefetchScalarGridSpec(
            num_scalar_prefetch=0,
            grid=grid,
            in_specs=[
                # embeddings tile: changes every step.
                pl.BlockSpec((tB, tC), lambda i, j: (i, j)),
                # PE tile: depends only on the column axis; it is ~0.4% of
                # the per-step DMA traffic, so re-fetching it is free.
                pl.BlockSpec((1, tC), lambda i, j: (0, j)),
            ],
            out_specs=pl.BlockSpec((tB, tC), lambda i, j: (i, j)),
        ),
        compiler_params=pltpu.CompilerParams(
            dimension_semantics=("parallel", "parallel"),
            vmem_limit_bytes=vmem_limit,
        ),
    )(x2, pe_row)

    return out2.reshape(B, S, D)


def _reference(embeddings):
    """Pure-JAX reference mirroring the PyTorch/numpy table construction."""
    B, S, D = embeddings.shape
    pos = jnp.arange(S, dtype=jnp.float32)[:, None]
    i = jnp.arange(D)
    exponent = ((i // 2) * 2).astype(jnp.float32) / float(D)
    angle = pos / jnp.power(10000.0, exponent)
    pe = jnp.where((i % 2) == 0, jnp.sin(angle), jnp.cos(angle)).astype(jnp.float32)
    return embeddings.astype(jnp.float32) + pe[None]


if __name__ == "__main__":
    key = jax.random.PRNGKey(0)

    # Small shapes consistent with the module (batch=2, seq=8, d_model=32).
    batch, seq_len, d_model = 2, 8, 32
    x = jax.random.normal(key, (batch, seq_len, d_model), dtype=jnp.float32)

    out = jax.block_until_ready(positional_encoding_forward(x))
    ref = _reference(x)
    assert out.shape == (batch, seq_len, d_model)
    assert jnp.allclose(out, ref, atol=1e-5, rtol=1e-5)

    # Larger shape exercising the (potentially multi-block) tiled path.
    x2 = jax.random.normal(jax.random.PRNGKey(0), (16, 128, 64), dtype=jnp.float32)
    out2 = jax.block_until_ready(positional_encoding_forward(x2))
    assert jnp.allclose(out2, _reference(x2), atol=1e-5, rtol=1e-5)

    # bf16 path exercises the dtype-aware (16-sublane) tile selection.
    x3 = jax.random.normal(jax.random.PRNGKey(0), (2, 8, 32), dtype=jnp.bfloat16)
    out3 = jax.block_until_ready(positional_encoding_forward(x3))
    assert jnp.allclose(out3.astype(jnp.float32), _reference(x3), atol=0.1)

    print("KERNEL_OK")
</pallas_src>

<mosaic_0001>
module attributes {stable_mosaic.version = 11 : i64} {
  func.func @_add_pe_kernel(%arg0: i32, %arg1: i32, %arg2: memref<2x256xf32, #tpu.memory_space<vmem>>, %arg3: memref<1x256xf32, #tpu.memory_space<vmem>>, %arg4: memref<2x256xf32, #tpu.memory_space<vmem>>) attributes {dimension_semantics = [#tpu.dimension_semantics<parallel>, #tpu.dimension_semantics<parallel>], iteration_bounds = array<i64: 1, 1>, scalar_prefetch = 0 : i64, scratch_operands = 0 : i64, tpu.core_type = #tpu.core_type<tc>, window_params = [{transform_indices = @transform_0, window_bounds = array<i64: 2, 256>}, {transform_indices = @transform_1, window_bounds = array<i64: 1, 256>}, {transform_indices = @transform_2, window_bounds = array<i64: 2, 256>}]} {
    %c0 = arith.constant 0 : index
    %c0_0 = arith.constant 0 : index
    %0 = vector.load %arg2[%c0, %c0_0] : memref<2x256xf32, #tpu.memory_space<vmem>>, vector<2x256xf32>
    %c0_1 = arith.constant 0 : index
    %c0_2 = arith.constant 0 : index
    %1 = vector.load %arg3[%c0_1, %c0_2] : memref<1x256xf32, #tpu.memory_space<vmem>>, vector<1x256xf32>
    %2 = vector.broadcast %1 : vector<1x256xf32> to vector<2x256xf32>
    %3 = arith.addf %0, %2 : vector<2x256xf32>
    %c0_3 = arith.constant 0 : index
    %c0_4 = arith.constant 0 : index
    %4 = vector.load %arg4[%c0_3, %c0_4] : memref<2x256xf32, #tpu.memory_space<vmem>>, vector<2x256xf32>
    tpu.vector_store %arg4[%c0_3, %c0_4], %3 {strides = array<i32>} : memref<2x256xf32, #tpu.memory_space<vmem>>, vector<2x256xf32>,
    return
  }
  func.func @transform_0(%arg0: i32, %arg1: i32) -> (i32, i32) {
    %c0_i32 = arith.constant 0 : i32
    return %arg0, %arg1 : i32, i32
  }
  func.func @transform_1(%arg0: i32, %arg1: i32) -> (i32, i32) {
    %c0_i32 = arith.constant 0 : i32
    %c0_i32_0 = arith.constant 0 : i32
    return %c0_i32, %arg1 : i32, i32
  }
  func.func @transform_2(%arg0: i32, %arg1: i32) -> (i32, i32) {
    %c0_i32 = arith.constant 0 : i32
    return %arg0, %arg1 : i32, i32
  }
}

</mosaic_0001>

<llo_original>
// kernel: positional_encoding_forward.1
$region0: #{positional_encoding_forward.1}
  #allocation0 [shape = 'u32[]', space=smem, size = 0x4, offset = 0x4, fixed_abs, tag = 'smem constant byte address 0x4 - core index']
  #allocation1 [shape = 'u32[144,128]{1,0:T(1,128)}', space=vmem, size = 0x12000, scoped, tag = 'internal scratch']
  %s0 = inlined_call_operand.vmem [shape: f32[2,256], index: 0, kind: input, shape index: {}]
  %s1 = inlined_call_operand.vmem [shape: f32[1,256], index: 1, kind: input, shape index: {}]
  %s2 = inlined_call_operand.vmem [shape: f32[2,256], index: 2, kind: output, shape index: {}]
  %s3 = sld [smem:[#allocation0]]
  $region18: #{positional_encoding_forward.1} parent=0
    _
  %s5 = ssub.s32 1, %s3
  %s6 = scalar_select 0, %s5, %s3
  // Predicated region
  $region2: #{positional_encoding_forward.1} parent=0 // pred_check
    _
  $region3: #{positional_encoding_forward.1} parent=0 // pred_check_branch
    %8 = sbr.rel (0) target = $region5
  $region4: #{positional_encoding_forward.1} parent=0 // pred_region
    _
  $region5: #{positional_encoding_forward.1} parent=0 // pred_fallthru
    _
  // Predicated region
  $region6: #{positional_encoding_forward.1} parent=0 // pred_check
    _
  $region7: #{positional_encoding_forward.1} parent=0 // pred_check_branch
    %10 = sbr.rel (0) target = $region9
  $region8: #{positional_encoding_forward.1} parent=0 // pred_region
    _
  $region9: #{positional_encoding_forward.1} parent=0 // pred_fallthru
    _
  %v11 = vld [vmem:[%s0] sm:$0xf]
  %v12 = vld [vmem:[%s1] sm:$0x3]
  %v14 = vlaneseq
  %v15 = vshrl.u32 %v14, 7
  %v16 = vsub.s32 0, %v15
  %v17 = vrot.slane %v12, %v16
  %v18 = vlaneseq
  %v19 = vshrl.u32 %v18, 7
  %v20 = vsub.s32 1, %v19
  %v21 = vrot.slane %v12, %v20
  %v22 = vcombine.low %v17, %v21
  %v24 = vunpack.c.l.s4 1983009808
  %v25 = vunpack.c.0.s8 %v24
  %v26 = vlaneseq
  %v27 = vshrl.u32 %v26, 7
  %v28 = vsub.s32 %v25, %v27
  %v29 = vrot.slane %v22, %v28
  %v31 = vadd.f32 %v11, %v29
  %32 = vst [vmem:[%s2] sm:$0xf] %v31
  // Predicated region
  $region10: #{positional_encoding_forward.1} parent=0 // pred_check
    _
  $region11: #{positional_encoding_forward.1} parent=0 // pred_check_branch
    %34 = sbr.rel (0) target = $region13
  $region12: #{positional_encoding_forward.1} parent=0 // pred_region
    _
  $region13: #{positional_encoding_forward.1} parent=0 // pred_fallthru
    _
  // Predicated region
  $region14: #{positional_encoding_forward.1} parent=0 // pred_check
    _
  $region15: #{positional_encoding_forward.1} parent=0 // pred_check_branch
    %36 = sbr.rel (0) target = $region17
  $region16: #{positional_encoding_forward.1} parent=0 // pred_region
    _
  $region17: #{positional_encoding_forward.1} parent=0 // pred_fallthru
    _

</llo_original>
